<compile_context>
chip_gen: v7x
topology: tpu7x:2x2x1
jax: 0.10.0
libtpu: 0.0.40
codegen_flags: <defaults>
</compile_context>

<pallas_src>
import math

import jax
import jax.numpy as jnp
from jax.experimental import pallas as pl
from jax.experimental.pallas import tpu as pltpu


# -----------------------------------------------------------------------------
# Kernel: one (row-tile, col-tile) block of  relu(x @ W + b)
# -----------------------------------------------------------------------------
def _linear_relu_kernel(x_ref, w_ref, b_ref, o_ref):
    w = w_ref[...]
    # Per-tile cast of x to the weight dtype (no-op on the f32 path). Riding the
    # VPU here keeps x's HBM traffic to a single f32 read instead of an extra
    # wrapper-side cast pass.
    x = x_ref[...].astype(w.dtype)
    h = jnp.dot(x, w, preferred_element_type=jnp.float32)   # MXU, f32 accumulate
    h = h + b_ref[...]                                       # bias in f32
    o_ref[...] = jnp.maximum(h, 0.0).astype(o_ref.dtype)     # fused ReLU epilogue


def _round_up(v, m):
    return (v + m - 1) // m * m


def _vmem_capacity_bytes():
    try:
        return int(pltpu.get_tpu_info().vmem_capacity_bytes)
    except Exception:
        return 64 << 20  # conservative fallback (v7x per-TensorCore VMEM)


def _vmem_budget_bytes(tm, tn, k, x_itemsize, w_itemsize, out_itemsize):
    # Pallas double-buffers every input/output block by default, including the
    # constant-index weight block -> count it twice.
    need = (2 * tm * k * x_itemsize          # x row tile (double-buffered)
            + 2 * k * tn * w_itemsize        # weight block (double-buffered)
            + 2 * tn * 4                     # bias block
            + 2 * tm * tn * out_itemsize)    # output tile (double-buffered)
    cap = _vmem_capacity_bytes()
    headroom = 8 << 20                       # compiler scratch / semaphores
    return int(min(max(2 * need, 32 << 20), cap - headroom))


# -----------------------------------------------------------------------------
# One-time parameter preparation (call once, reuse across forwards).
#   use_bf16=True : weight stored bf16 -> native MXU path, half the weight DMA.
#   use_bf16=False: exact f32 semantics vs. the PyTorch reference.
# Bias stays f32 (added after the f32 accumulation).
# -----------------------------------------------------------------------------
def prepare_params(w, b, *, use_bf16=True):
    w_prep = w.astype(jnp.bfloat16 if use_bf16 else jnp.float32)
    b_prep = b.reshape(1, -1).astype(jnp.float32)
    return w_prep, b_prep


# -----------------------------------------------------------------------------
# Forward: relu(x @ w + b).  x:(N,K), w_prep:(K,M), b_prep:(1,M) -> (N,M)
# -----------------------------------------------------------------------------
def low_layer_forward(x, w_prep, b_prep, *, tm=256, tn=512, out_dtype=None):
    N, K = x.shape
    Kw, M = w_prep.shape
    assert K == Kw and b_prep.shape == (1, M)
    out_dtype = jnp.dtype(out_dtype if out_dtype is not None else x.dtype)

    # Row tile: multiple of 8 sublanes; shrink so small problems still get
    # >= 4 grid steps (DMA pipelining + megacore sharding of the parallel axis).
    TM = max(8, min(tm, _round_up(N, 8)))
    if N >= 32 and pl.cdiv(N, TM) < 4:
        TM = _round_up(pl.cdiv(N, 4), 8)

    # Column tile: full M when it is small (block == full dim, no padding or
    # output slicing needed); a 128-multiple tile for large weights so the
    # per-step weight block (K x TN) fits v7x's 64 MiB VMEM.
    TN = M if (M <= tn or M < 128) else tn

    grid = (pl.cdiv(N, TM), pl.cdiv(M, TN))

    out = pl.pallas_call(
        _linear_relu_kernel,
        out_shape=jax.ShapeDtypeStruct((N, M), out_dtype),
        grid_spec=pltpu.PrefetchScalarGridSpec(
            num_scalar_prefetch=0,
            grid=grid,
            in_specs=[
                pl.BlockSpec((TM, K), lambda i, j: (i, 0)),   # x row tile
                pl.BlockSpec((K, TN), lambda i, j: (0, j)),   # weight col block
                pl.BlockSpec((1, TN), lambda i, j: (0, j)),   # bias col block
            ],
            out_specs=pl.BlockSpec((TM, TN), lambda i, j: (i, j)),
        ),
        compiler_params=pltpu.CompilerParams(
            dimension_semantics=("parallel", "parallel"),
            vmem_limit_bytes=_vmem_budget_bytes(
                TM, TN, K,
                x.dtype.itemsize, w_prep.dtype.itemsize, out_dtype.itemsize),
        ),
    )(x, w_prep, b_prep)
    return out


# -----------------------------------------------------------------------------
# Parameter init matching the PyTorch module
#   weight: kaiming_normal_ (fan_in = in_feats, gain sqrt(2)) -> std = sqrt(2/K)
#   bias  : nn.Linear default uniform(-1/sqrt(K), 1/sqrt(K)) (not re-initialized)
# Weight is stored (in_feats, out_feats) so the kernel does a row-major matmul.
# -----------------------------------------------------------------------------
def init_low_layer(key, in_feats, out_feats):
    kw, kb = jax.random.split(key)
    w = jax.random.normal(kw, (in_feats, out_feats), jnp.float32) * math.sqrt(2.0 / in_feats)
    bound = 1.0 / math.sqrt(in_feats)
    b = jax.random.uniform(kb, (out_feats,), jnp.float32, -bound, bound)
    return w, b


# -----------------------------------------------------------------------------
if __name__ == "__main__":
    IN_FEATS = 16
    OUT_FEATS = 32
    N = 64  # batch of rows

    root = jax.random.PRNGKey(0)
    k_param, k_x = jax.random.split(root)

    w, b = init_low_layer(k_param, IN_FEATS, OUT_FEATS)
    x = jax.random.normal(k_x, (N, IN_FEATS), jnp.float32)

    y_ref = jnp.maximum(x @ w + b, 0.0)  # plain-JAX reference

    # Default fast path: bf16 weights into the MXU, f32 accumulation.
    w16, b16 = prepare_params(w, b, use_bf16=True)
    y = low_layer_forward(x, w16, b16)
    jax.block_until_ready(y)
    assert y.shape == (N, OUT_FEATS)
    assert bool(jnp.allclose(y, y_ref, atol=8e-2, rtol=5e-2))

    # Exact f32 path (tight parity with the PyTorch reference).
    w32, b32 = prepare_params(w, b, use_bf16=False)
    y32 = low_layer_forward(x, w32, b32)
    jax.block_until_ready(y32)
    assert bool(jnp.allclose(y32, y_ref, atol=1e-5, rtol=1e-5))

    print("KERNEL_OK")
</pallas_src>

<mosaic_0001>
module attributes {stable_mosaic.version = 11 : i64} {
  func.func @_linear_relu_kernel(%arg0: i32, %arg1: i32, %arg2: memref<16x16xf32, #tpu.memory_space<vmem>>, %arg3: memref<16x32xbf16, #tpu.memory_space<vmem>>, %arg4: memref<1x32xf32, #tpu.memory_space<vmem>>, %arg5: memref<16x32xf32, #tpu.memory_space<vmem>>) attributes {dimension_semantics = [#tpu.dimension_semantics<parallel>, #tpu.dimension_semantics<parallel>], iteration_bounds = array<i64: 4, 1>, scalar_prefetch = 0 : i64, scratch_operands = 0 : i64, tpu.core_type = #tpu.core_type<tc>, window_params = [{transform_indices = @transform_0, window_bounds = array<i64: 16, 16>}, {transform_indices = @transform_1, window_bounds = array<i64: 16, 32>}, {transform_indices = @transform_2, window_bounds = array<i64: 1, 32>}, {transform_indices = @transform_3, window_bounds = array<i64: 16, 32>}]} {
    %c0 = arith.constant 0 : index
    %c0_0 = arith.constant 0 : index
    %0 = vector.load %arg3[%c0, %c0_0] : memref<16x32xbf16, #tpu.memory_space<vmem>>, vector<16x32xbf16>
    %c0_1 = arith.constant 0 : index
    %c0_2 = arith.constant 0 : index
    %1 = vector.load %arg2[%c0_1, %c0_2] : memref<16x16xf32, #tpu.memory_space<vmem>>, vector<16x16xf32>
    %2 = arith.truncf %1 : vector<16x16xf32> to vector<16x16xbf16>
    %cst = arith.constant dense<0.000000e+00> : vector<16x32xf32>
    %3 = tpu.matmul %2, %0, %cst {dimension_numbers = #tpu.dot_dimension_numbers<[1], [0], [0], [1], [0, 0, 1, 1], [], []>} : vector<16x16xbf16>, vector<16x32xbf16>, vector<16x32xf32> -> vector<16x32xf32>
    %c0_3 = arith.constant 0 : index
    %c0_4 = arith.constant 0 : index
    %4 = vector.load %arg4[%c0_3, %c0_4] : memref<1x32xf32, #tpu.memory_space<vmem>>, vector<1x32xf32>
    %5 = vector.broadcast %4 : vector<1x32xf32> to vector<16x32xf32>
    %6 = arith.addf %3, %5 : vector<16x32xf32>
    %cst_5 = arith.constant 0.000000e+00 : f32
    %7 = vector.broadcast %cst_5 : f32 to vector<16x32xf32>
    %8 = arith.maximumf %6, %7 : vector<16x32xf32>
    %c0_6 = arith.constant 0 : index
    %c0_7 = arith.constant 0 : index
    %9 = vector.load %arg5[%c0_6, %c0_7] : memref<16x32xf32, #tpu.memory_space<vmem>>, vector<16x32xf32>
    tpu.vector_store %arg5[%c0_6, %c0_7], %8 {strides = array<i32>} : memref<16x32xf32, #tpu.memory_space<vmem>>, vector<16x32xf32>,
    return
  }
  func.func @transform_0(%arg0: i32, %arg1: i32) -> (i32, i32) {
    %c0_i32 = arith.constant 0 : i32
    %c0_i32_0 = arith.constant 0 : i32
    return %arg0, %c0_i32 : i32, i32
  }
  func.func @transform_1(%arg0: i32, %arg1: i32) -> (i32, i32) {
    %c0_i32 = arith.constant 0 : i32
    %c0_i32_0 = arith.constant 0 : i32
    return %c0_i32, %arg1 : i32, i32
  }
  func.func @transform_2(%arg0: i32, %arg1: i32) -> (i32, i32) {
    %c0_i32 = arith.constant 0 : i32
    %c0_i32_0 = arith.constant 0 : i32
    return %c0_i32, %arg1 : i32, i32
  }
  func.func @transform_3(%arg0: i32, %arg1: i32) -> (i32, i32) {
    %c0_i32 = arith.constant 0 : i32
    return %arg0, %arg1 : i32, i32
  }
}

</mosaic_0001>

<llo_original>
// kernel: tpu_custom_call.1
$region0: #{tpu_custom_call.1}
  #allocation0 [shape = 'u32[]', space=smem, size = 0x4, offset = 0x4, fixed_abs, tag = 'smem constant byte address 0x4 - core index']
  #allocation1 [shape = 'u32[144,128]{1,0:T(1,128)}', space=vmem, size = 0x12000, scoped, tag = 'internal scratch']
  %s0 = inlined_call_operand.vmem [shape: f32[64,16], index: 0, kind: input, shape index: {}]
  %s1 = inlined_call_operand.vmem [shape: bf16[16,32], index: 1, kind: input, shape index: {}]
  %s2 = inlined_call_operand.vmem [shape: f32[1,32], index: 2, kind: input, shape index: {}]
  %s3 = inlined_call_operand.vmem [shape: f32[64,32], index: 3, kind: output, shape index: {}]
  %s4 = sld [smem:[#allocation0]]
  $region45: #{tpu_custom_call.1} parent=0
    _
  %s6 = ssub.s32 1, %s4
  %s7 = scalar_select 0, %s6, %s4
  loop: start=0, step=1, limit=6
  $region2: #{tpu_custom_call.1} parent=0 // loop_pre_header
    _
  $region3: #{tpu_custom_call.1} parent=0 // loop_header
    %s9 = sphi 0, %s13
    %p10 = scmp.ge.s32.totalorder %s9, 6
    %s16 = sphi 0, %s28
    %s17 = sphi 0, %s24
    %s18 = sphi 0, %s16
    %s19 = sphi 0, %s17
    %s20 = sphi 0, %s18
    %s21 = sphi 0, %s19
    %s31 = sphi 0, %s33
    %s34 = sphi 0, %s31
    %s35 = sphi 0, %s34
    %s51 = sphi 0, %s35
    %s57 = sphi 0, %s59
    %s60 = sphi 0, %s57
    %s61 = sphi 0, %s60
    %s77 = sphi 0, %s61
    %s83 = sphi 0, %s85
    %s86 = sphi 0, %s83
    %s87 = sphi 0, %s86
    %s103 = sphi 0, %s87
    %s111 = sphi 0, %s113
    %s114 = sphi 0, %s111
    %s115 = sphi 0, %s114
    %s131 = sphi 0, %s115
  $region4: #{tpu_custom_call.1} parent=0 // loop_header_branch
    %12 = sbr.rel (%p10) target = $region8
  $region5: #{tpu_custom_call.1} parent=0 // loop_body
    %s14 = ssub.s32 %s9, 1
    %s15 = ssub.s32 %s9, 2
    %s22 = sadd.s32 1, %s17
    %p23 = scmp.ge.s32.totalorder %s22, 1
    %s24 = scalar_select %p23, 0, %s22
    %s25 = sadd.s32 1, %s16
    %s26 = scalar_select %p23, %s25, %s16
    %p27 = scmp.ge.s32.totalorder %s26, 4
    %s28 = scalar_select %p27, 0, %s26
    %s29 = ssub.s32 %s16, %s28
    %p30 = scmp.eq.s32.totalorder %s29, 0
    %s32 = sadd.s32 %s31, 1
    %s33 = scalar_select %p30, %s31, %s32
    %p36 = pneg %p30
    %p37 = scmp.eq.s32.totalorder %s9, 3
    %p38 = por %p36, %p37
    %p39 = scmp.ne.s32.totalorder %s31, %s34
    %p40 = scmp.eq.s32.totalorder %s9, 0
    %p41 = por %p39, %p40
    %p42 = scmp.ne.s32.totalorder %s31, %s34
    %p43 = scmp.eq.s32.totalorder %s14, 3
    %p44 = por %p42, %p43
    %p45 = scmp.ne.s32.totalorder %s34, %s35
    %p46 = scmp.eq.s32.totalorder %s14, 0
    %p47 = por %p45, %p46
    %p48 = scmp.ne.s32.totalorder %s34, %s35
    %p49 = scmp.eq.s32.totalorder %s15, 3
    %p50 = por %p48, %p49
    %p52 = scmp.ne.s32.totalorder %s35, %s51
    %p53 = scmp.eq.s32.totalorder %s15, 0
    %p54 = por %p52, %p53
    %s55 = ssub.s32 %s17, %s24
    %p56 = scmp.eq.s32.totalorder %s55, 0
    %s58 = sadd.s32 %s57, 1
    %s59 = scalar_select %p56, %s57, %s58
    %p62 = pneg %p56
    %p63 = scmp.eq.s32.totalorder %s9, 3
    %p64 = por %p62, %p63
    %p65 = scmp.ne.s32.totalorder %s57, %s60
    %p66 = scmp.eq.s32.totalorder %s9, 0
    %p67 = por %p65, %p66
    %p68 = scmp.ne.s32.totalorder %s57, %s60
    %p69 = scmp.eq.s32.totalorder %s14, 3
    %p70 = por %p68, %p69
    %p71 = scmp.ne.s32.totalorder %s60, %s61
    %p72 = scmp.eq.s32.totalorder %s14, 0
    %p73 = por %p71, %p72
    %p74 = scmp.ne.s32.totalorder %s60, %s61
    %p75 = scmp.eq.s32.totalorder %s15, 3
    %p76 = por %p74, %p75
    %p78 = scmp.ne.s32.totalorder %s61, %s77
    %p79 = scmp.eq.s32.totalorder %s15, 0
    %p80 = por %p78, %p79
    %s81 = ssub.s32 %s17, %s24
    %p82 = scmp.eq.s32.totalorder %s81, 0
    %s84 = sadd.s32 %s83, 1
    %s85 = scalar_select %p82, %s83, %s84
    %p88 = pneg %p82
    %p89 = scmp.eq.s32.totalorder %s9, 3
    %p90 = por %p88, %p89
    %p91 = scmp.ne.s32.totalorder %s83, %s86
    %p92 = scmp.eq.s32.totalorder %s9, 0
    %p93 = por %p91, %p92
    %p94 = scmp.ne.s32.totalorder %s83, %s86
    %p95 = scmp.eq.s32.totalorder %s14, 3
    %p96 = por %p94, %p95
    %p97 = scmp.ne.s32.totalorder %s86, %s87
    %p98 = scmp.eq.s32.totalorder %s14, 0
    %p99 = por %p97, %p98
    %p100 = scmp.ne.s32.totalorder %s86, %s87
    %p101 = scmp.eq.s32.totalorder %s15, 3
    %p102 = por %p100, %p101
    %p104 = scmp.ne.s32.totalorder %s87, %s103
    %p105 = scmp.eq.s32.totalorder %s15, 0
    %p106 = por %p104, %p105
    %s107 = ssub.s32 %s16, %s28
    %s108 = ssub.s32 %s17, %s24
    %s109 = sor.u32 %s107, %s108
    %p110 = scmp.eq.s32.totalorder %s109, 0
    %s112 = sadd.s32 %s111, 1
    %s113 = scalar_select %p110, %s111, %s112
    %p116 = pneg %p110
    %p117 = scmp.eq.s32.totalorder %s9, 3
    %p118 = por %p116, %p117
    %p119 = scmp.ne.s32.totalorder %s111, %s114
    %p120 = scmp.eq.s32.totalorder %s9, 0
    %p121 = por %p119, %p120
    %p122 = scmp.ne.s32.totalorder %s111, %s114
    %p123 = scmp.eq.s32.totalorder %s14, 3
    %p124 = por %p122, %p123
    %p125 = scmp.ne.s32.totalorder %s114, %s115
    %p126 = scmp.eq.s32.totalorder %s14, 0
    %p127 = por %p125, %p126
    %p128 = scmp.ne.s32.totalorder %s114, %s115
    %p129 = scmp.eq.s32.totalorder %s15, 3
    %p130 = por %p128, %p129
    %p132 = scmp.ne.s32.totalorder %s115, %s131
    %p133 = scmp.eq.s32.totalorder %s15, 0
    %p134 = por %p132, %p133
    %p135 = scmp.le.s32.totalorder 1, %s9
    %p136 = scmp.lt.s32.totalorder %s9, 5
    %p137 = pnand %p135, %p136
    %p138 = pneg %p137
    // Predicated region
    $region9: #{tpu_custom_call.1} parent=5 // pred_check
      _
    $region10: #{tpu_custom_call.1} parent=5 // pred_check_branch
      %140 = sbr.rel (%p137) target = $region12
    $region11: #{tpu_custom_call.1} parent=5 // pred_region
      %s141 = ssub.s32 %s9, 1
      // Predicated region
      $region13: #{tpu_custom_call.1} parent=11 // pred_check
        %p142 = pneg %p73
      $region14: #{tpu_custom_call.1} parent=11 // pred_check_branch
        %144 = sbr.rel (%p142) target = $region16
      $region15: #{tpu_custom_call.1} parent=11 // pred_region
        %p145 = scmp.lt.s32.totalorder %s19, 0
        %s146 = scalar_select %p145, %s19, 0
        %s147 = smul.addr %s146, 4
        %s148 = scalar_lea.vmem %s1, %s147
      $region16: #{tpu_custom_call.1} parent=11 // pred_fallthru
        _
      // Predicated region
      $region17: #{tpu_custom_call.1} parent=11 // pred_check
        %p149 = pneg %p99
      $region18: #{tpu_custom_call.1} parent=11 // pred_check_branch
        %151 = sbr.rel (%p149) target = $region20
      $region19: #{tpu_custom_call.1} parent=11 // pred_region
        %p152 = scmp.lt.s32.totalorder %s19, 0
        %s153 = scalar_select %p152, %s19, 0
        %s154 = scalar_lea.vmem %s2, %s153
      $region20: #{tpu_custom_call.1} parent=11 // pred_fallthru
        _
    $region12: #{tpu_custom_call.1} parent=5 // pred_fallthru
      _
    %p155 = scmp.lt.s32.totalorder %s9, 4
    // Predicated region
    $region21: #{tpu_custom_call.1} parent=5 // pred_check
      %p156 = pneg %p155
    $region22: #{tpu_custom_call.1} parent=5 // pred_check_branch
      %158 = sbr.rel (%p156) target = $region24
    $region23: #{tpu_custom_call.1} parent=5 // pred_region
      // Predicated region
      $region25: #{tpu_custom_call.1} parent=23 // pred_check
        %p159 = pneg %p41
      $region26: #{tpu_custom_call.1} parent=23 // pred_check_branch
        %161 = sbr.rel (%p159) target = $region28
      $region27: #{tpu_custom_call.1} parent=23 // pred_region
        %s162 = smul.u32 2, %s16
        %p163 = scmp.lt.s32.totalorder %s162, 7
        %s164 = scalar_select %p163, %s162, 7
        %s165 = smul.addr %s164, 8
        %s166 = scalar_lea.vmem %s0, %s165
        %s167 = smul.u32 2, %s16
      $region28: #{tpu_custom_call.1} parent=23 // pred_fallthru
        _
    $region24: #{tpu_custom_call.1} parent=5 // pred_fallthru
      _
    %p168 = scmp.le.s32.totalorder 1, %s9
    %p169 = scmp.lt.s32.totalorder %s9, 5
    %p170 = pnand %p168, %p169
    %p171 = pneg %p170
    // Predicated region
    $region29: #{tpu_custom_call.1} parent=5 // pred_check
      _
    $region30: #{tpu_custom_call.1} parent=5 // pred_check_branch
      %173 = sbr.rel (%p170) target = $region32
    $region31: #{tpu_custom_call.1} parent=5 // pred_region
      %s174 = ssub.s32 %s9, 1
      %s175 = smul.u32 2, %s18
      %p176 = scmp.lt.s32.totalorder %s175, 7
      %s177 = scalar_select %p176, %s175, 7
      %s178 = smul.addr %s177, 8
      %s179 = scalar_lea.vmem %s0, %s178
      %p180 = pneg %p47
      %p181 = pneg %p44
      %p182 = scmp.lt.s32.totalorder %s19, 0
      %s183 = scalar_select %p182, %s19, 0
      %s184 = smul.addr %s183, 4
      %s185 = scalar_lea.vmem %s1, %s184
      %p186 = pneg %p73
      %p187 = pneg %p70
      %p188 = scmp.lt.s32.totalorder %s19, 0
      %s189 = scalar_select %p188, %s19, 0
      %s190 = scalar_lea.vmem %s2, %s189
      %p191 = pneg %p99
      %p192 = pneg %p96
      %p193 = pneg %p127
      %p194 = pneg %p124
      %s195 = smul.u32 2, %s18
      %p196 = scmp.lt.s32.totalorder %s195, 7
      %s197 = scalar_select %p196, %s195, 7
      %p198 = scmp.lt.s32.totalorder %s19, 0
      %s199 = scalar_select %p198, %s19, 0
      %s200 = sadd.s32 %s199, %s197
      %s201 = smul.addr %s200, 8
      %s202 = scalar_lea.vmem %s3, %s201
      %s203 = smul.u32 2, %s18
      %p204 = scmp.lt.s32.totalorder %s203, 7
      %s205 = scalar_select %p204, %s203, 7
      %s206 = smul.addr %s205, 8
      %s207 = scalar_lea.vmem %s0, %s206
      %s208 = smul.u32 2, %s18
      %p209 = scmp.lt.s32.totalorder %s19, 0
      %s210 = scalar_select %p209, %s19, 0
      %s211 = smul.addr %s210, 4
      %s212 = scalar_lea.vmem %s1, %s211
      %p213 = scmp.lt.s32.totalorder %s19, 0
      %s214 = scalar_select %p213, %s19, 0
      %s215 = scalar_lea.vmem %s2, %s214
      %s216 = smul.u32 2, %s18
      %p217 = scmp.lt.s32.totalorder %s216, 7
      %s218 = scalar_select %p217, %s216, 7
      %p219 = scmp.lt.s32.totalorder %s19, 0
      %s220 = scalar_select %p219, %s19, 0
      %s221 = sadd.s32 %s220, %s218
      %s222 = smul.addr %s221, 8
      %s223 = scalar_lea.vmem %s3, %s222
      %s224 = smul.u32 2, %s18
      %v226 = vld [vmem:[%s212] sm:$0xf]
      %v227 = vld [vmem:[%s212 + $0x4] sm:$0xf]
      %v228 = vld [vmem:[%s207] sm:$0xff]
      %v229 = vld [vmem:[%s207 + $0x8] sm:$0xff]
      %v230 = vpack.c.bf16 %v229, %v228
      %v231 = vld [vmem:[%s215] sm:$0x1]
      %v233 = vlaneseq
      %v234 = vshrl.u32 %v233, 7
      %v235 = vsub.s32 0, %v234
      %v236 = vrot.slane %v231, %v235
      %v240 = vunpack.c.l.b16 %v226
      %v241 = vunpack.c.l.b16 %v227
      %v242 = vpack.c.b16 %v241, %v240
      %vm244 = vcmask 130048
      %v246 = vsel %vm244, %v230, 0
      %248 = vmatprep.subr.bf16.mxu0 0
      %249 = vmatpush1.bf16.msra.mxu0 %v242
      %250 = vmatprep.subr.bf16.mxu0 0
      %251 = vmatpush1.bf16.msra.mxu0 0
      %252 = vmatprep.subr.bf16.mxu0 0
      %253 = vmatpush1.bf16.msra.mxu0 0
      %254 = vmatprep.subr.bf16.mxu0 0
      %255 = vmatpush1.bf16.msra.mxu0 0
      %256 = vmatprep.subr.bf16.mxu0 0
      %257 = vmatpush1.bf16.msra.mxu0 0
      %258 = vmatprep.subr.bf16.mxu0 0
      %259 = vmatpush1.bf16.msra.mxu0 0
      %260 = vmatprep.subr.bf16.mxu0 0
      %261 = vmatpush1.bf16.msra.mxu0 0
      %262 = vmatprep.subr.bf16.mxu0 0
      %263 = vmatpush1.bf16.msra.mxu0 0
      %264 = vmatprep.subr.bf16.mxu0 0
      %265 = vmatpush1.bf16.msra.mxu0 0
      %266 = vmatprep.subr.bf16.mxu0 0
      %267 = vmatpush1.bf16.msra.mxu0 0
      %268 = vmatprep.subr.bf16.mxu0 0
      %269 = vmatpush1.bf16.msra.mxu0 0
      %270 = vmatprep.subr.bf16.mxu0 0
      %271 = vmatpush1.bf16.msra.mxu0 0
      %272 = vmatprep.subr.bf16.mxu0 0
      %273 = vmatpush1.bf16.msra.mxu0 0
      %274 = vmatprep.subr.bf16.mxu0 0
      %275 = vmatpush1.bf16.msra.mxu0 0
      %276 = vmatprep.subr.bf16.mxu0 0
      %277 = vmatpush1.bf16.msra.mxu0 0
      %278 = vmatprep.subr.bf16.mxu0 0
      %279 = vmatpush1.bf16.msra.mxu0 0
      %280 = vmatprep.mubr.bf16.mxu0 0
      %281 = vmatmul.mubr.bf16.gmra.mrb[0].mxu0 %v246
      %v282 = vpop.f32.mrb[0].mxu0
      %v283 = vadd.f32 %v236, %v282
      %v284 = vpop.f32.mrb[0].mxu0
      %v285 = vpop.f32.mrb[0].mxu0
      %v286 = vadd.f32 %v236, %v285
      %v287 = vpop.f32.mrb[0].mxu0
      %288 = vdwg.mxu0
      %v289 = vmax.f32 %v283, 0.0
      %v290 = vmax.f32 %v286, 0.0
      %vm291 = vcmask 261120
      %292 = vst.msk [vmem:[%s223] sm:$0xff] %vm291, %v289
      %293 = vst.msk [vmem:[%s223 + $0x8] sm:$0xff] %vm291, %v290
      %s294 = smul.u32 2, %s18
      %p295 = scmp.lt.s32.totalorder %s294, 7
      %s296 = scalar_select %p295, %s294, 7
      %p297 = scmp.lt.s32.totalorder %s19, 0
      %s298 = scalar_select %p297, %s19, 0
      %s299 = sadd.s32 %s298, %s296
      %s300 = smul.addr %s299, 8
      %s301 = scalar_lea.vmem %s3, %s300
      // Predicated region
      $region33: #{tpu_custom_call.1} parent=31 // pred_check
        %p302 = pneg %p124
      $region34: #{tpu_custom_call.1} parent=31 // pred_check_branch
        %304 = sbr.rel (%p302) target = $region36
      $region35: #{tpu_custom_call.1} parent=31 // pred_region
        %s305 = smul.u32 2, %s18
      $region36: #{tpu_custom_call.1} parent=31 // pred_fallthru
        _
    $region32: #{tpu_custom_call.1} parent=5 // pred_fallthru
      _
    %p306 = scmp.le.s32.totalorder 2, %s9
    // Predicated region
    $region37: #{tpu_custom_call.1} parent=5 // pred_check
      %p307 = pneg %p306
    $region38: #{tpu_custom_call.1} parent=5 // pred_check_branch
      %309 = sbr.rel (%p307) target = $region40
    $region39: #{tpu_custom_call.1} parent=5 // pred_region
      %s310 = ssub.s32 %s9, 2
      // Predicated region
      $region41: #{tpu_custom_call.1} parent=39 // pred_check
        %p311 = pneg %p130
      $region42: #{tpu_custom_call.1} parent=39 // pred_check_branch
        %313 = sbr.rel (%p311) target = $region44
      $region43: #{tpu_custom_call.1} parent=39 // pred_region
        %s314 = smul.u32 2, %s20
        %p315 = scmp.lt.s32.totalorder %s314, 7
        %s316 = scalar_select %p315, %s314, 7
        %p317 = scmp.lt.s32.totalorder %s21, 0
        %s318 = scalar_select %p317, %s21, 0
        %s319 = sadd.s32 %s318, %s316
        %s320 = smul.addr %s319, 8
        %s321 = scalar_lea.vmem %s3, %s320
      $region44: #{tpu_custom_call.1} parent=39 // pred_fallthru
        _
    $region40: #{tpu_custom_call.1} parent=5 // pred_fallthru
      _
  $region6: #{tpu_custom_call.1} parent=0 // loop_footer
    %s13 = sadd.s32 1, %s9
  $region7: #{tpu_custom_call.1} parent=0 // loop_footer_branch
    %8 = sbr.rel target = $region3
  $region8: #{tpu_custom_call.1} parent=0 // loop_exit
    _

</llo_original>
